<compile_context>
chip_gen: v6e
topology: v6e:2x2x1
jax: 0.10.0
libtpu: 0.0.40
codegen_flags: <defaults>
</compile_context>

<pallas_src>
import functools

import jax
import jax.numpy as jnp
import numpy as np
from jax.experimental import pallas as pl
from jax.experimental.pallas import tpu as pltpu

_LANE = 128      # vreg lane width
_SUBLANE = 8     # f32 sublane count


def _round_up(n, m):
    return (n + m - 1) // m * m


# ----------------------------------------------------------------------------
# Kernel: one batch tile -> fused (x @ W1 + b1) -> ReLU -> (@ W2 + b2)
# ----------------------------------------------------------------------------
def _encoder_kernel(x_ref, w1_ref, b1_ref, w2_ref, b2_ref, o_ref):
    # In-kernel cast (f32 -> bf16 on the fast path, no-op on the f32 path):
    # x streams from HBM at its native dtype/width; the cast is free VPU filler.
    x = x_ref[...].astype(w1_ref.dtype)
    # First matmul on the MXU, f32 accumulation.
    h = jnp.dot(x, w1_ref[...], preferred_element_type=jnp.float32)
    # Bias + ReLU in f32 on the VPU (b1 is (1, HID_P), broadcasts over rows).
    h = jnp.maximum(h + b1_ref[...], 0.0)
    # Second matmul: cast activations to the weight dtype so the MXU runs its
    # native-rate path; accumulate in f32.
    y = jnp.dot(h.astype(w2_ref.dtype), w2_ref[...],
                preferred_element_type=jnp.float32)
    # Un-padded (tb, code_dim) store — only real columns go back to HBM.
    o_ref[...] = (y + b2_ref[...]).astype(o_ref.dtype)


# ----------------------------------------------------------------------------
# Parameter prep (outside the hot path).
#   * K of the first matmul stays at num_inputs (x is streamed un-padded).
#   * hidden dim is padded to 128 lanes (tiny, resident, exact zero padding).
#   * N of the second matmul stays at code_dim (output is written un-padded).
# ----------------------------------------------------------------------------
def prepare_encoder_params(w1, b1, w2, b2, *, use_bf16_matmul=True):
    """w1: (num_inputs, hidden), b1: (hidden,), w2: (hidden, code_dim), b2: (code_dim,)."""
    num_inputs, hidden = w1.shape
    hidden2, code_dim = w2.shape
    assert hidden == hidden2

    hid_p = _round_up(hidden, _LANE)
    w_dtype = jnp.bfloat16 if use_bf16_matmul else jnp.float32

    w1_p = jnp.zeros((num_inputs, hid_p), w_dtype).at[:, :hidden].set(
        w1.astype(w_dtype))
    b1_p = jnp.zeros((1, hid_p), jnp.float32).at[0, :hidden].set(
        b1.astype(jnp.float32))
    w2_p = jnp.zeros((hid_p, code_dim), w_dtype).at[:hidden, :].set(
        w2.astype(w_dtype))
    b2_p = b2.astype(jnp.float32).reshape(1, code_dim)

    return (w1_p, b1_p, w2_p, b2_p), (num_inputs, code_dim)


# ----------------------------------------------------------------------------
# Forward wrapper: pad batch dim only, run the gridded pallas_call, slice rows.
# ----------------------------------------------------------------------------
def encoder_20_forward(x, padded_params, dims=None, *, block_batch=1024):
    """x: (B, num_inputs) -> (B, code_dim)."""
    w1_p, b1_p, w2_p, b2_p = padded_params
    B, num_inputs = x.shape
    assert num_inputs == w1_p.shape[0]
    hid_p = w1_p.shape[1]
    code_dim = w2_p.shape[1]

    # --- batch tiling ---------------------------------------------------
    b8 = _round_up(B, _SUBLANE)
    block_batch = max(_SUBLANE, _round_up(block_batch, _SUBLANE))
    n_steps = pl.cdiv(b8, block_batch)
    # Guarantee >= 2 grid steps when the batch allows, so the "parallel"
    # batch axis can shard across both TensorCores on v7x.
    if n_steps < 2 and b8 >= 2 * _SUBLANE:
        n_steps = 2
    tb = _round_up(pl.cdiv(b8, n_steps), _SUBLANE)
    b_pad = n_steps * tb

    # Pad only the batch dim (cheap, avoids relying on OOB-read behavior for
    # the trailing partial tile). Feature dim is untouched.
    if b_pad != B:
        x_p = jnp.zeros((b_pad, num_inputs), x.dtype).at[:B, :].set(x)
    else:
        x_p = x

    grid = (n_steps,)
    out_dtype = x.dtype

    itemsize = lambda a: jnp.dtype(a).itemsize
    flops = 2 * b_pad * (num_inputs * hid_p + hid_p * code_dim)
    bytes_accessed = (
        x_p.size * itemsize(x_p.dtype)
        + w1_p.size * itemsize(w1_p.dtype) + b1_p.size * itemsize(b1_p.dtype)
        + w2_p.size * itemsize(w2_p.dtype) + b2_p.size * itemsize(b2_p.dtype)
        + b_pad * code_dim * itemsize(out_dtype))

    out_p = pl.pallas_call(
        _encoder_kernel,
        out_shape=jax.ShapeDtypeStruct((b_pad, code_dim), out_dtype),
        grid=grid,
        in_specs=[
            pl.BlockSpec((tb, num_inputs), lambda i: (i, 0)),     # x tile (pipelined)
            pl.BlockSpec((num_inputs, hid_p), lambda i: (0, 0)),  # w1 (resident)
            pl.BlockSpec((1, hid_p), lambda i: (0, 0)),           # b1 (resident)
            pl.BlockSpec((hid_p, code_dim), lambda i: (0, 0)),    # w2 (resident)
            pl.BlockSpec((1, code_dim), lambda i: (0, 0)),        # b2 (resident)
        ],
        out_specs=pl.BlockSpec((tb, code_dim), lambda i: (i, 0)),
        compiler_params=pltpu.CompilerParams(
            dimension_semantics=("parallel",)),                   # 2 TCs on v7x
        cost_estimate=pl.CostEstimate(
            flops=flops, transcendentals=0, bytes_accessed=bytes_accessed),
    )(x_p, w1_p, b1_p, w2_p, b2_p)

    return out_p[:B] if b_pad != B else out_p


# ----------------------------------------------------------------------------
# Init (mirrors the PyTorch module: Xavier-uniform weights, biases = 0.01)
# ----------------------------------------------------------------------------
def init_encoder_20_params(key, num_inputs, code_dim, hidden=20, dtype=jnp.float32):
    k1, k2 = jax.random.split(key)

    def xavier_uniform(k, fan_in, fan_out):
        limit = np.sqrt(6.0 / (fan_in + fan_out))
        # stored as (in, out) so the kernel computes x @ W
        return jax.random.uniform(k, (fan_in, fan_out), dtype=dtype,
                                  minval=-limit, maxval=limit)

    w1 = xavier_uniform(k1, num_inputs, hidden)
    b1 = jnp.full((hidden,), 0.01, dtype=dtype)
    w2 = xavier_uniform(k2, hidden, code_dim)
    b2 = jnp.full((code_dim,), 0.01, dtype=dtype)
    return w1, b1, w2, b2


def encoder_20_ref(x, w1, b1, w2, b2):
    """Pure-JAX f32 reference (matches the PyTorch forward)."""
    h = jnp.maximum(x @ w1 + b1, 0.0)
    return h @ w2 + b2


# ----------------------------------------------------------------------------
if __name__ == "__main__":
    key = jax.random.PRNGKey(0)
    k_x, k_x2, k_p = jax.random.split(key, 3)

    num_inputs = 32
    code_dim = 16
    w1, b1, w2, b2 = init_encoder_20_params(k_p, num_inputs, code_dim)

    # --- test 1: small batch, exact f32 path ------------------------------
    batch = 8
    x = jax.random.normal(k_x, (batch, num_inputs), dtype=jnp.float32)
    params_f32, dims = prepare_encoder_params(w1, b1, w2, b2,
                                              use_bf16_matmul=False)
    out_f32 = jax.block_until_ready(encoder_20_forward(x, params_f32, dims))
    assert out_f32.shape == (batch, code_dim)
    ref = encoder_20_ref(x, w1, b1, w2, b2)
    np.testing.assert_allclose(np.asarray(out_f32), np.asarray(ref),
                               rtol=1e-5, atol=1e-5)

    # --- test 2: bf16-MXU fast path, ragged batch, multi-step grid --------
    batch2 = 200                      # forces batch padding + >=2 grid steps
    x2 = jax.random.normal(k_x2, (batch2, num_inputs), dtype=jnp.float32)
    params_bf16, dims = prepare_encoder_params(w1, b1, w2, b2,
                                               use_bf16_matmul=True)
    out_bf16 = jax.block_until_ready(
        encoder_20_forward(x2, params_bf16, dims))
    assert out_bf16.shape == (batch2, code_dim)
    ref2 = encoder_20_ref(x2, w1, b1, w2, b2)
    np.testing.assert_allclose(np.asarray(out_bf16), np.asarray(ref2),
                               rtol=5e-2, atol=5e-2)

    print("KERNEL_OK")
</pallas_src>

<mosaic_0001>
module attributes {stable_mosaic.version = 11 : i64} {
  func.func @_encoder_kernel(%arg0: i32, %arg1: memref<8x32xf32, #tpu.memory_space<vmem>>, %arg2: memref<32x128xf32, #tpu.memory_space<vmem>>, %arg3: memref<1x128xf32, #tpu.memory_space<vmem>>, %arg4: memref<128x16xf32, #tpu.memory_space<vmem>>, %arg5: memref<1x16xf32, #tpu.memory_space<vmem>>, %arg6: memref<8x16xf32, #tpu.memory_space<vmem>>) attributes {dimension_semantics = [#tpu.dimension_semantics<parallel>], iteration_bounds = array<i64: 1>, scalar_prefetch = 0 : i64, scratch_operands = 0 : i64, tpu.core_type = #tpu.core_type<tc>, window_params = [{transform_indices = @transform_0, window_bounds = array<i64: 8, 32>}, {pipeline_mode = #tpu.pipeline_mode<synchronous>, transform_indices = @transform_1, window_bounds = array<i64: 32, 128>}, {pipeline_mode = #tpu.pipeline_mode<synchronous>, transform_indices = @transform_2, window_bounds = array<i64: 1, 128>}, {pipeline_mode = #tpu.pipeline_mode<synchronous>, transform_indices = @transform_3, window_bounds = array<i64: 128, 16>}, {pipeline_mode = #tpu.pipeline_mode<synchronous>, transform_indices = @transform_4, window_bounds = array<i64: 1, 16>}, {transform_indices = @transform_5, window_bounds = array<i64: 8, 16>}]} {
    %c0 = arith.constant 0 : index
    %c0_0 = arith.constant 0 : index
    %0 = vector.load %arg1[%c0, %c0_0] : memref<8x32xf32, #tpu.memory_space<vmem>>, vector<8x32xf32>
    %c0_1 = arith.constant 0 : index
    %c0_2 = arith.constant 0 : index
    %1 = vector.load %arg2[%c0_1, %c0_2] : memref<32x128xf32, #tpu.memory_space<vmem>>, vector<32x128xf32>
    %cst = arith.constant dense<0.000000e+00> : vector<8x128xf32>
    %2 = tpu.matmul %0, %1, %cst {dimension_numbers = #tpu.dot_dimension_numbers<[1], [0], [0], [1], [0, 0, 1, 1], [], []>} : vector<8x32xf32>, vector<32x128xf32>, vector<8x128xf32> -> vector<8x128xf32>
    %c0_3 = arith.constant 0 : index
    %c0_4 = arith.constant 0 : index
    %3 = vector.load %arg3[%c0_3, %c0_4] : memref<1x128xf32, #tpu.memory_space<vmem>>, vector<1x128xf32>
    %4 = vector.broadcast %3 : vector<1x128xf32> to vector<8x128xf32>
    %5 = arith.addf %2, %4 : vector<8x128xf32>
    %cst_5 = arith.constant 0.000000e+00 : f32
    %6 = vector.broadcast %cst_5 : f32 to vector<8x128xf32>
    %7 = arith.maximumf %5, %6 : vector<8x128xf32>
    %c0_6 = arith.constant 0 : index
    %c0_7 = arith.constant 0 : index
    %8 = vector.load %arg4[%c0_6, %c0_7] : memref<128x16xf32, #tpu.memory_space<vmem>>, vector<128x16xf32>
    %cst_8 = arith.constant dense<0.000000e+00> : vector<8x16xf32>
    %9 = tpu.matmul %7, %8, %cst_8 {dimension_numbers = #tpu.dot_dimension_numbers<[1], [0], [0], [1], [0, 0, 1, 1], [], []>} : vector<8x128xf32>, vector<128x16xf32>, vector<8x16xf32> -> vector<8x16xf32>
    %c0_9 = arith.constant 0 : index
    %c0_10 = arith.constant 0 : index
    %10 = vector.load %arg5[%c0_9, %c0_10] : memref<1x16xf32, #tpu.memory_space<vmem>>, vector<1x16xf32>
    %11 = vector.broadcast %10 : vector<1x16xf32> to vector<8x16xf32>
    %12 = arith.addf %9, %11 : vector<8x16xf32>
    %c0_11 = arith.constant 0 : index
    %c0_12 = arith.constant 0 : index
    %13 = vector.load %arg6[%c0_11, %c0_12] : memref<8x16xf32, #tpu.memory_space<vmem>>, vector<8x16xf32>
    tpu.vector_store %arg6[%c0_11, %c0_12], %12 {strides = array<i32>} : memref<8x16xf32, #tpu.memory_space<vmem>>, vector<8x16xf32>,
    return
  }
  func.func @transform_0(%arg0: i32) -> (i32, i32) {
    %c0_i32 = arith.constant 0 : i32
    %c0_i32_0 = arith.constant 0 : i32
    return %arg0, %c0_i32 : i32, i32
  }
  func.func @transform_1(%arg0: i32) -> (i32, i32) {
    %c0_i32 = arith.constant 0 : i32
    %c0_i32_0 = arith.constant 0 : i32
    %c0_i32_1 = arith.constant 0 : i32
    return %c0_i32, %c0_i32_0 : i32, i32
  }
  func.func @transform_2(%arg0: i32) -> (i32, i32) {
    %c0_i32 = arith.constant 0 : i32
    %c0_i32_0 = arith.constant 0 : i32
    %c0_i32_1 = arith.constant 0 : i32
    return %c0_i32, %c0_i32_0 : i32, i32
  }
  func.func @transform_3(%arg0: i32) -> (i32, i32) {
    %c0_i32 = arith.constant 0 : i32
    %c0_i32_0 = arith.constant 0 : i32
    %c0_i32_1 = arith.constant 0 : i32
    return %c0_i32, %c0_i32_0 : i32, i32
  }
  func.func @transform_4(%arg0: i32) -> (i32, i32) {
    %c0_i32 = arith.constant 0 : i32
    %c0_i32_0 = arith.constant 0 : i32
    %c0_i32_1 = arith.constant 0 : i32
    return %c0_i32, %c0_i32_0 : i32, i32
  }
  func.func @transform_5(%arg0: i32) -> (i32, i32) {
    %c0_i32 = arith.constant 0 : i32
    %c0_i32_0 = arith.constant 0 : i32
    return %arg0, %c0_i32 : i32, i32
  }
}

</mosaic_0001>

<llo_original>
// kernel: tpu_custom_call.1
$region0: #{tpu_custom_call.1}
  #allocation0 [shape = 'u32[]', space=smem, size = 0x4, offset = 0x4, fixed_abs, tag = 'smem constant byte address 0x4 - core index']
  #allocation1 [shape = 'u32[144,128]{1,0:T(1,128)}', space=vmem, size = 0x12000, scoped, tag = 'internal scratch']
  %s0 = inlined_call_operand.vmem [shape: f32[8,32], index: 0, kind: input, shape index: {}]
  %s1 = inlined_call_operand.vmem [shape: f32[32,128], index: 1, kind: input, shape index: {}]
  %s2 = inlined_call_operand.vmem [shape: f32[1,128], index: 2, kind: input, shape index: {}]
  %s3 = inlined_call_operand.vmem [shape: f32[128,16], index: 3, kind: input, shape index: {}]
  %s4 = inlined_call_operand.vmem [shape: f32[1,16], index: 4, kind: input, shape index: {}]
  %s5 = inlined_call_operand.hbm [shape: f32[8,16], index: 5, kind: output, shape index: {}]
  %s6 = sld [smem:[#allocation0]]
  $region30: #{tpu_custom_call.1} parent=0
    _
  %s8 = ssub.s32 1, %s6
  %s9 = scalar_select 0, %s8, %s6
  $region1: #{tpu_custom_call.1} parent=0
    #allocation2 [shape = 'u8[4096]{0}', space=vmem, size = 0x1000, scoped, tag = 'output window, operand 0, single buffered']
    #allocation3 [shape = 's32[1]{0}', space=sflag, size = 0x4, scoped, tag = 'scoped memory for tpu_custom_call.1']
    %10 = vsyncpa [#allocation3], 0
    // Predicated region
    $region2: #{tpu_custom_call.1} parent=1 // pred_check
      _
    $region3: #{tpu_custom_call.1} parent=1 // pred_check_branch
      %12 = sbr.rel (0) target = $region5
    $region4: #{tpu_custom_call.1} parent=1 // pred_region
      _
    $region5: #{tpu_custom_call.1} parent=1 // pred_fallthru
      _
    // Predicated region
    $region6: #{tpu_custom_call.1} parent=1 // pred_check
      _
    $region7: #{tpu_custom_call.1} parent=1 // pred_check_branch
      %14 = sbr.rel (0) target = $region9
    $region8: #{tpu_custom_call.1} parent=1 // pred_region
      _
    $region9: #{tpu_custom_call.1} parent=1 // pred_fallthru
      _
    // Predicated region
    $region10: #{tpu_custom_call.1} parent=1 // pred_check
      _
    $region11: #{tpu_custom_call.1} parent=1 // pred_check_branch
      %16 = sbr.rel (0) target = $region13
    $region12: #{tpu_custom_call.1} parent=1 // pred_region
      _
    $region13: #{tpu_custom_call.1} parent=1 // pred_fallthru
      _
    // Predicated region
    $region14: #{tpu_custom_call.1} parent=1 // pred_check
      _
    $region15: #{tpu_custom_call.1} parent=1 // pred_check_branch
      %18 = sbr.rel (0) target = $region17
    $region16: #{tpu_custom_call.1} parent=1 // pred_region
      _
    $region17: #{tpu_custom_call.1} parent=1 // pred_fallthru
      _
    // Predicated region
    $region18: #{tpu_custom_call.1} parent=1 // pred_check
      _
    $region19: #{tpu_custom_call.1} parent=1 // pred_check_branch
      %20 = sbr.rel (0) target = $region21
    $region20: #{tpu_custom_call.1} parent=1 // pred_region
      _
    $region21: #{tpu_custom_call.1} parent=1 // pred_fallthru
      _
    %v21 = vld [vmem:[%s0] sm:$0xff]
    %v22 = vld [vmem:[%s1] sm:$0xff]
    %v23 = vld [vmem:[%s1 + $0x8] sm:$0xff]
    %v24 = vld [vmem:[%s1 + $0x10] sm:$0xff]
    %v25 = vld [vmem:[%s1 + $0x18] sm:$0xff]
    %v26 = vld [vmem:[%s2] sm:$0x1]
    %v28 = vlaneseq
    %v29 = vshrl.u32 %v28, 7
    %v30 = vsub.s32 0, %v29
    %v31 = vrot.slane %v26, %v30
    %vm33 = vcmask 261120
    %v35 = vsel %vm33, %v21, 0
    %37 = vmatprep.subr.mxu0 0.0
    %38 = vmatpush1.msra.mxu0 0.0
    %39 = vmatprep.subr.mxu0 0.0
    %40 = vmatpush1.msra.mxu0 0.0
    %41 = vmatprep.subr.mxu0 0.0
    %42 = vmatpush1.msra.mxu0 0.0
    %43 = vmatprep.subr.mxu0 0.0
    %44 = vmatpush1.msra.mxu0 0.0
    %45 = vmatprep.subr.mxu0 0.0
    %46 = vmatpush1.msra.mxu0 0.0
    %47 = vmatprep.subr.mxu0 0.0
    %48 = vmatpush1.msra.mxu0 0.0
    %49 = vmatprep.subr.mxu0 0.0
    %50 = vmatpush1.msra.mxu0 0.0
    %51 = vmatprep.subr.mxu0 0.0
    %52 = vmatpush1.msra.mxu0 0.0
    %53 = vmatprep.subr.mxu0 0.0
    %54 = vmatpush1.msra.mxu0 0.0
    %55 = vmatprep.subr.mxu0 0.0
    %56 = vmatpush1.msra.mxu0 0.0
    %57 = vmatprep.subr.mxu0 0.0
    %58 = vmatpush1.msra.mxu0 0.0
    %59 = vmatprep.subr.mxu0 0.0
    %60 = vmatpush1.msra.mxu0 0.0
    %61 = vmatprep.subr.mxu0 0.0
    %62 = vmatpush1.msra.mxu0 %v25
    %63 = vmatprep.subr.mxu0 0.0
    %64 = vmatpush1.msra.mxu0 %v24
    %65 = vmatprep.subr.mxu0 0.0
    %66 = vmatpush1.msra.mxu0 %v23
    %67 = vmatprep.subr.mxu0 0.0
    %68 = vmatpush1.msra.mxu0 %v22
    %69 = vmatprep.subr.mxu0 0.0
    %70 = vmatpush2.msra.mxu0 0.0
    %71 = vmatprep.subr.mxu0 0.0
    %72 = vmatpush2.msra.mxu0 0.0
    %73 = vmatprep.subr.mxu0 0.0
    %74 = vmatpush2.msra.mxu0 0.0
    %75 = vmatprep.subr.mxu0 0.0
    %76 = vmatpush2.msra.mxu0 0.0
    %77 = vmatprep.subr.mxu0 0.0
    %78 = vmatpush2.msra.mxu0 0.0
    %79 = vmatprep.subr.mxu0 0.0
    %80 = vmatpush2.msra.mxu0 0.0
    %81 = vmatprep.subr.mxu0 0.0
    %82 = vmatpush2.msra.mxu0 0.0
    %83 = vmatprep.subr.mxu0 0.0
    %84 = vmatpush2.msra.mxu0 0.0
    %85 = vmatprep.subr.mxu0 0.0
    %86 = vmatpush2.msra.mxu0 0.0
    %87 = vmatprep.subr.mxu0 0.0
    %88 = vmatpush2.msra.mxu0 0.0
    %89 = vmatprep.subr.mxu0 0.0
    %90 = vmatpush2.msra.mxu0 0.0
    %91 = vmatprep.subr.mxu0 0.0
    %92 = vmatpush2.msra.mxu0 0.0
    %93 = vmatprep.subr.mxu0 0.0
    %94 = vmatpush2.msra.mxu0 0.0
    %95 = vmatprep.subr.mxu0 0.0
    %96 = vmatpush2.msra.mxu0 0.0
    %97 = vmatprep.subr.mxu0 0.0
    %98 = vmatpush2.msra.mxu0 0.0
    %99 = vmatprep.subr.mxu0 0.0
    %100 = vmatpush2.msra.mxu0 0.0
    %101 = vmatprep.mubr.f32.mxu0 0.0
    %102 = vmatmul.mubr.f32.gmra.mxu0 %v35
    %v103 = vpop.f32.mrf.mxu0
    %v104 = vadd.f32 %v31, %v103
    %v105 = vpop.f32.mrf.mxu0
    %106 = vdwg.mxu0
    %v107 = vmax.f32 %v104, 0.0
    %v108 = vld [vmem:[%s3] sm:$0xff]
    %v109 = vld [vmem:[%s3 + $0x8] sm:$0xff]
    %v110 = vld [vmem:[%s3 + $0x10] sm:$0xff]
    %v111 = vld [vmem:[%s3 + $0x18] sm:$0xff]
    %v112 = vld [vmem:[%s3 + $0x20] sm:$0xff]
    %v113 = vld [vmem:[%s3 + $0x28] sm:$0xff]
    %v114 = vld [vmem:[%s3 + $0x30] sm:$0xff]
    %v115 = vld [vmem:[%s3 + $0x38] sm:$0xff]
    %v116 = vld [vmem:[%s3 + $0x40] sm:$0xff]
    %v117 = vld [vmem:[%s3 + $0x48] sm:$0xff]
    %v118 = vld [vmem:[%s3 + $0x50] sm:$0xff]
    %v119 = vld [vmem:[%s3 + $0x58] sm:$0xff]
    %v120 = vld [vmem:[%s3 + $0x60] sm:$0xff]
    %v121 = vld [vmem:[%s3 + $0x68] sm:$0xff]
    %v122 = vld [vmem:[%s3 + $0x70] sm:$0xff]
    %v123 = vld [vmem:[%s3 + $0x78] sm:$0xff]
    %v124 = vld [vmem:[%s4] sm:$0x1]
    %v126 = vlaneseq
    %v127 = vshrl.u32 %v126, 7
    %v128 = vsub.s32 0, %v127
    %v129 = vrot.slane %v124, %v128
    %131 = vmatprep.subr.mxu0 0.0
    %132 = vmatpush1.msra.mxu0 %v123
    %133 = vmatprep.subr.mxu0 0.0
    %134 = vmatpush1.msra.mxu0 %v122
    %135 = vmatprep.subr.mxu0 0.0
    %136 = vmatpush1.msra.mxu0 %v121
    %137 = vmatprep.subr.mxu0 0.0
    %138 = vmatpush1.msra.mxu0 %v120
    %139 = vmatprep.subr.mxu0 0.0
    %140 = vmatpush1.msra.mxu0 %v119
    %141 = vmatprep.subr.mxu0 0.0
    %142 = vmatpush1.msra.mxu0 %v118
    %143 = vmatprep.subr.mxu0 0.0
    %144 = vmatpush1.msra.mxu0 %v117
    %145 = vmatprep.subr.mxu0 0.0
    %146 = vmatpush1.msra.mxu0 %v116
    %147 = vmatprep.subr.mxu0 0.0
    %148 = vmatpush1.msra.mxu0 %v115
    %149 = vmatprep.subr.mxu0 0.0
    %150 = vmatpush1.msra.mxu0 %v114
    %151 = vmatprep.subr.mxu0 0.0
    %152 = vmatpush1.msra.mxu0 %v113
    %153 = vmatprep.subr.mxu0 0.0
    %154 = vmatpush1.msra.mxu0 %v112
    %155 = vmatprep.subr.mxu0 0.0
    %156 = vmatpush1.msra.mxu0 %v111
    %157 = vmatprep.subr.mxu0 0.0
    %158 = vmatpush1.msra.mxu0 %v110
    %159 = vmatprep.subr.mxu0 0.0
    %160 = vmatpush1.msra.mxu0 %v109
    %161 = vmatprep.subr.mxu0 0.0
    %162 = vmatpush1.msra.mxu0 %v108
    %163 = vmatprep.subr.mxu0 0.0
    %164 = vmatpush2.msra.mxu0 0.0
    %165 = vmatprep.subr.mxu0 0.0
    %166 = vmatpush2.msra.mxu0 0.0
    %167 = vmatprep.subr.mxu0 0.0
    %168 = vmatpush2.msra.mxu0 0.0
    %169 = vmatprep.subr.mxu0 0.0
    %170 = vmatpush2.msra.mxu0 0.0
    %171 = vmatprep.subr.mxu0 0.0
    %172 = vmatpush2.msra.mxu0 0.0
    %173 = vmatprep.subr.mxu0 0.0
    %174 = vmatpush2.msra.mxu0 0.0
    %175 = vmatprep.subr.mxu0 0.0
    %176 = vmatpush2.msra.mxu0 0.0
    %177 = vmatprep.subr.mxu0 0.0
    %178 = vmatpush2.msra.mxu0 0.0
    %179 = vmatprep.subr.mxu0 0.0
    %180 = vmatpush2.msra.mxu0 0.0
    %181 = vmatprep.subr.mxu0 0.0
    %182 = vmatpush2.msra.mxu0 0.0
    %183 = vmatprep.subr.mxu0 0.0
    %184 = vmatpush2.msra.mxu0 0.0
    %185 = vmatprep.subr.mxu0 0.0
    %186 = vmatpush2.msra.mxu0 0.0
    %187 = vmatprep.subr.mxu0 0.0
    %188 = vmatpush2.msra.mxu0 0.0
    %189 = vmatprep.subr.mxu0 0.0
    %190 = vmatpush2.msra.mxu0 0.0
    %191 = vmatprep.subr.mxu0 0.0
    %192 = vmatpush2.msra.mxu0 0.0
    %193 = vmatprep.subr.mxu0 0.0
    %194 = vmatpush2.msra.mxu0 0.0
    %195 = vmatprep.mubr.f32.mxu0 0.0
    %196 = vmatmul.mubr.f32.gmra.mxu0 %v107
    %v197 = vpop.f32.mrf.mxu0
    %v198 = vadd.f32 %v129, %v197
    %v199 = vpop.f32.mrf.mxu0
    %200 = vdwg.mxu0
    %vm201 = vcmask 130048
    %202 = vst.msk [vmem:[#allocation2] sm:$0xff] %vm201, %v198
    // Predicated region
    $region22: #{tpu_custom_call.1} parent=1 // pred_check
      _
    $region23: #{tpu_custom_call.1} parent=1 // pred_check_branch
      %204 = sbr.rel (0) target = $region25
    $region24: #{tpu_custom_call.1} parent=1 // pred_region
      %s206 = ssub.s32 128, 128
      %207 = vsyncadd [#allocation3], %s206
      %s209 = sshll.u32 [#allocation2], 4
      %s210 = int_to_ptr.vmem [resolvable:$true] %s209
      %212 = dma.vmem_to_hbm [thread:$0]  %s210, 128, %s5, [#allocation3]
    $region25: #{tpu_custom_call.1} parent=1 // pred_fallthru
      _
    // Predicated region
    $region26: #{tpu_custom_call.1} parent=1 // pred_check
      _
    $region27: #{tpu_custom_call.1} parent=1 // pred_check_branch
      %214 = sbr.rel (0) target = $region29
    $region28: #{tpu_custom_call.1} parent=1 // pred_region
      %215 = dma.done [#allocation3], 128
    $region29: #{tpu_custom_call.1} parent=1 // pred_fallthru
      _
    %216 = vsyncpa [#allocation3], 1

</llo_original>
